<compile_context>
chip_gen: v7x
topology: tpu7x:2x2x1
jax: 0.10.0
libtpu: 0.0.40
codegen_flags: <defaults>
</compile_context>

<pallas_src>
import jax
import jax.numpy as jnp
from jax.experimental import pallas as pl
from jax.experimental.pallas import tpu as pltpu


def _make_kernel(in_dim: int, k_pad: int):
    pad = k_pad - in_dim

    def kernel(x_ref, w_ref, b_ref, o_ref, xp_ref):
        # xp_ref: (TILE_M, k_pad) compute-dtype scratch, used as the lane-dense
        # MXU LHS. Zero the padded K columns every step (cheap; correct under
        # any megacore split of the M axis), then copy the real 234 columns.
        if pad:
            xp_ref[:, in_dim:] = jnp.zeros((xp_ref.shape[0], pad), xp_ref.dtype)
        xp_ref[:, :in_dim] = x_ref[...].astype(xp_ref.dtype)

        # Plain (TM, K) @ (K, N) matmul on the MXU, f32 accumulation.
        y = jax.lax.dot_general(
            xp_ref[...], w_ref[...],
            dimension_numbers=(((1,), (0,)), ((), ())),
            preferred_element_type=jnp.float32,
        )
        o_ref[...] = (y + b_ref[...]).astype(o_ref.dtype)

    return kernel


def prepare_params(weight, bias, *, compute_dtype=jnp.bfloat16):
    """One-time layout prep. Store (and reuse) the returned params permanently.

    weight: (out_dim, in_dim) PyTorch nn.Linear layout, bias: (out_dim,).
    Returns w_t: (k_pad, out_dim) compute_dtype, b2: (1, out_dim) f32.
    """
    out_dim, in_dim = weight.shape
    k_pad = ((in_dim + 127) // 128) * 128            # 234 -> 256
    w_t = jnp.pad(weight, ((0, 0), (0, k_pad - in_dim))).T.astype(compute_dtype)
    b2 = bias.reshape(1, out_dim).astype(jnp.float32)
    return w_t, b2


def snp_encoder_linear(x, w_t, b2, *, tile_m=512):
    """y = x @ weight.T + bias (torch.nn.Linear.forward) on pre-laid-out params.

    x:   (B, in_dim)            f32 (or bf16)
    w_t: (k_pad, out_dim)       compute dtype, from prepare_params
    b2:  (1, out_dim)           f32, from prepare_params
    """
    B, in_dim = x.shape
    k_pad, out_dim = w_t.shape
    out_dtype = x.dtype
    compute_dtype = w_t.dtype

    # M tiling: one block for small B; weight-resident 512-row tiles otherwise.
    if B <= tile_m:
        tm, b_pad = B, B
    else:
        tm = tile_m
        b_pad = pl.cdiv(B, tm) * tm
    x_in = x if b_pad == B else jnp.pad(x, ((0, b_pad - B), (0, 0)))
    grid_m = b_pad // tm

    x_item = jnp.dtype(x.dtype).itemsize
    w_item = jnp.dtype(compute_dtype).itemsize
    o_item = jnp.dtype(out_dtype).itemsize
    cost = pl.CostEstimate(
        flops=2 * b_pad * k_pad * out_dim,
        transcendentals=0,
        bytes_accessed=(b_pad * in_dim * x_item        # x (read once, raw)
                        + k_pad * out_dim * w_item     # weight (resident)
                        + out_dim * 4                  # bias
                        + b_pad * out_dim * o_item),   # out
    )

    out = pl.pallas_call(
        _make_kernel(in_dim, k_pad),
        out_shape=jax.ShapeDtypeStruct((b_pad, out_dim), out_dtype),
        grid_spec=pltpu.PrefetchScalarGridSpec(
            num_scalar_prefetch=0,
            grid=(grid_m,),
            in_specs=[
                pl.BlockSpec((tm, in_dim), lambda i: (i, 0)),      # x rows
                pl.BlockSpec((k_pad, out_dim), lambda i: (0, 0)),  # weight: constant
                pl.BlockSpec((1, out_dim), lambda i: (0, 0)),      # bias: constant
            ],
            out_specs=pl.BlockSpec((tm, out_dim), lambda i: (i, 0)),
            scratch_shapes=[pltpu.VMEM((tm, k_pad), compute_dtype)],
        ),
        compiler_params=pltpu.CompilerParams(
            dimension_semantics=("parallel",),
            vmem_limit_bytes=32 * 1024 * 1024,   # explicit; tiles budgeted well below
        ),
        cost_estimate=cost,
    )(x_in, w_t, b2)

    return out if b_pad == B else out[:B]


def init_params(key, in_dim=234, out_dim=256, dtype=jnp.float32):
    # Deterministic init matching torch.nn.Linear: U(-1/sqrt(in_dim), 1/sqrt(in_dim)).
    kw, kb = jax.random.split(key)
    bound = 1.0 / jnp.sqrt(jnp.asarray(in_dim, dtype=jnp.float32))
    weight = jax.random.uniform(kw, (out_dim, in_dim), dtype, -bound, bound)
    bias = jax.random.uniform(kb, (out_dim,), dtype, -bound, bound)
    return weight, bias


if __name__ == "__main__":
    key = jax.random.PRNGKey(0)
    k_x, k_p = jax.random.split(key)

    in_dim, out_dim = 234, 256
    batch = 8

    x = jax.random.normal(k_x, (batch, in_dim), dtype=jnp.float32)
    weight, bias = init_params(k_p, in_dim=in_dim, out_dim=out_dim)

    # One-time parameter layout prep (stored permanently in this layout).
    w_t, b2 = prepare_params(weight, bias)

    fwd = jax.jit(snp_encoder_linear)
    y = jax.block_until_ready(fwd(x, w_t, b2))

    # Reference check against plain JAX (same math as torch.nn.Linear).
    # Tolerance accounts for bf16 operand quantization (f32 accumulate in-kernel).
    y_ref = x @ weight.T + bias
    assert y.shape == (batch, out_dim)
    assert jnp.allclose(y, y_ref, atol=2e-2, rtol=2e-2)

    print("KERNEL_OK")
</pallas_src>

<mosaic_0001>
module attributes {stable_mosaic.version = 11 : i64} {
  func.func @kernel(%arg0: i32, %arg1: memref<8x234xf32, #tpu.memory_space<vmem>>, %arg2: memref<256x256xbf16, #tpu.memory_space<vmem>>, %arg3: memref<1x256xf32, #tpu.memory_space<vmem>>, %arg4: memref<8x256xf32, #tpu.memory_space<vmem>>, %arg5: memref<8x256xbf16, #tpu.memory_space<vmem>>) attributes {dimension_semantics = [#tpu.dimension_semantics<parallel>], iteration_bounds = array<i64: 1>, scalar_prefetch = 0 : i64, scratch_operands = 1 : i64, tpu.core_type = #tpu.core_type<tc>, window_params = [{transform_indices = @transform_0, window_bounds = array<i64: 8, 234>}, {pipeline_mode = #tpu.pipeline_mode<synchronous>, transform_indices = @transform_1, window_bounds = array<i64: 256, 256>}, {pipeline_mode = #tpu.pipeline_mode<synchronous>, transform_indices = @transform_2, window_bounds = array<i64: 1, 256>}, {transform_indices = @transform_3, window_bounds = array<i64: 8, 256>}]} {
    %cst = arith.constant 0.000000e+00 : bf16
    %0 = vector.broadcast %cst : bf16 to vector<8x22xbf16>
    %c0 = arith.constant 0 : index
    %c234 = arith.constant 234 : index
    %1 = vector.load %arg5[%c0, %c234] : memref<8x256xbf16, #tpu.memory_space<vmem>>, vector<8x22xbf16>
    tpu.vector_store %arg5[%c0, %c234], %0 {strides = array<i32>} : memref<8x256xbf16, #tpu.memory_space<vmem>>, vector<8x22xbf16>,
    %c0_0 = arith.constant 0 : index
    %c0_1 = arith.constant 0 : index
    %2 = vector.load %arg1[%c0_0, %c0_1] : memref<8x234xf32, #tpu.memory_space<vmem>>, vector<8x234xf32>
    %3 = arith.truncf %2 : vector<8x234xf32> to vector<8x234xbf16>
    %c0_2 = arith.constant 0 : index
    %c0_3 = arith.constant 0 : index
    %4 = vector.load %arg5[%c0_2, %c0_3] : memref<8x256xbf16, #tpu.memory_space<vmem>>, vector<8x234xbf16>
    tpu.vector_store %arg5[%c0_2, %c0_3], %3 {strides = array<i32>} : memref<8x256xbf16, #tpu.memory_space<vmem>>, vector<8x234xbf16>,
    %c0_4 = arith.constant 0 : index
    %c0_5 = arith.constant 0 : index
    %5 = vector.load %arg5[%c0_4, %c0_5] : memref<8x256xbf16, #tpu.memory_space<vmem>>, vector<8x256xbf16>
    %c0_6 = arith.constant 0 : index
    %c0_7 = arith.constant 0 : index
    %6 = vector.load %arg2[%c0_6, %c0_7] : memref<256x256xbf16, #tpu.memory_space<vmem>>, vector<256x256xbf16>
    %cst_8 = arith.constant dense<0.000000e+00> : vector<8x256xf32>
    %7 = tpu.matmul %5, %6, %cst_8 {dimension_numbers = #tpu.dot_dimension_numbers<[1], [0], [0], [1], [0, 0, 1, 1], [], []>} : vector<8x256xbf16>, vector<256x256xbf16>, vector<8x256xf32> -> vector<8x256xf32>
    %c0_9 = arith.constant 0 : index
    %c0_10 = arith.constant 0 : index
    %8 = vector.load %arg3[%c0_9, %c0_10] : memref<1x256xf32, #tpu.memory_space<vmem>>, vector<1x256xf32>
    %9 = vector.broadcast %8 : vector<1x256xf32> to vector<8x256xf32>
    %10 = arith.addf %7, %9 : vector<8x256xf32>
    %c0_11 = arith.constant 0 : index
    %c0_12 = arith.constant 0 : index
    %11 = vector.load %arg4[%c0_11, %c0_12] : memref<8x256xf32, #tpu.memory_space<vmem>>, vector<8x256xf32>
    tpu.vector_store %arg4[%c0_11, %c0_12], %10 {strides = array<i32>} : memref<8x256xf32, #tpu.memory_space<vmem>>, vector<8x256xf32>,
    return
  }
  func.func @transform_0(%arg0: i32) -> (i32, i32) {
    %c0_i32 = arith.constant 0 : i32
    %c0_i32_0 = arith.constant 0 : i32
    return %arg0, %c0_i32 : i32, i32
  }
  func.func @transform_1(%arg0: i32) -> (i32, i32) {
    %c0_i32 = arith.constant 0 : i32
    %c0_i32_0 = arith.constant 0 : i32
    %c0_i32_1 = arith.constant 0 : i32
    return %c0_i32, %c0_i32_0 : i32, i32
  }
  func.func @transform_2(%arg0: i32) -> (i32, i32) {
    %c0_i32 = arith.constant 0 : i32
    %c0_i32_0 = arith.constant 0 : i32
    %c0_i32_1 = arith.constant 0 : i32
    return %c0_i32, %c0_i32_0 : i32, i32
  }
  func.func @transform_3(%arg0: i32) -> (i32, i32) {
    %c0_i32 = arith.constant 0 : i32
    %c0_i32_0 = arith.constant 0 : i32
    return %arg0, %c0_i32 : i32, i32
  }
}

</mosaic_0001>

<llo_original>
// kernel: snp_encoder_linear.1
$region0: #{snp_encoder_linear.1}
  #allocation0 [shape = 'u32[]', space=smem, size = 0x4, offset = 0x4, fixed_abs, tag = 'smem constant byte address 0x4 - core index']
  #allocation1 [shape = 'u32[144,128]{1,0:T(1,128)}', space=vmem, size = 0x12000, scoped, tag = 'internal scratch']
  #allocation2 [shape = 'bf16[8,256]{1,0:T(8,128)(2,1)}', space=vmem, size = 0x1000, scoped, tag = 'scratch operand']
  %s0 = inlined_call_operand.hbm [shape: f32[8,234], index: 0, kind: input, shape index: {}]
  %s1 = inlined_call_operand.hbm [shape: bf16[256,256], index: 1, kind: input, shape index: {}]
  %s2 = inlined_call_operand.vmem [shape: f32[1,256], index: 2, kind: input, shape index: {}]
  %s3 = inlined_call_operand.hbm [shape: f32[8,256], index: 3, kind: output, shape index: {}]
  %s4 = sld [smem:[#allocation0]]
  $region30: #{snp_encoder_linear.1} parent=0
    _
  %s6 = ssub.s32 1, %s4
  %s7 = scalar_select 0, %s6, %s4
  $region1: #{snp_encoder_linear.1} parent=0
    #allocation3 [shape = 'u8[8192]{0}', space=vmem, size = 0x2000, scoped, tag = 'input window, operand 0, single buffered']
    #allocation4 [shape = 's32[1]{0}', space=sflag, size = 0x4, scoped, tag = 'scoped memory for snp_encoder_linear.1']
    #allocation5 [shape = 's32[1]{0}', space=sflag, size = 0x4, scoped, tag = 'scoped memory for snp_encoder_linear.1']
    #allocation6 [shape = 'u8[131072]{0}', space=vmem, size = 0x20000, scoped, tag = 'input window, operand 1, single buffered']
    #allocation7 [shape = 's32[1]{0}', space=sflag, size = 0x4, scoped, tag = 'scoped memory for snp_encoder_linear.1']
    #allocation8 [shape = 'u8[8192]{0}', space=vmem, size = 0x2000, scoped, tag = 'output window, operand 0, single buffered']
    %8 = vsyncpa [#allocation4], 0
    %9 = vsyncpa [#allocation7], 0
    %10 = vsyncpa [#allocation5], 0
    // Predicated region
    $region2: #{snp_encoder_linear.1} parent=1 // pred_check
      _
    $region3: #{snp_encoder_linear.1} parent=1 // pred_check_branch
      %12 = sbr.rel (0) target = $region5
    $region4: #{snp_encoder_linear.1} parent=1 // pred_region
      %s14 = ssub.s32 256, 256
      %15 = vsyncadd [#allocation4], %s14
      %s17 = sshll.u32 [#allocation3], 4
      %s18 = int_to_ptr.vmem [resolvable:$true] %s17
      %20 = dma.hbm_to_vmem [thread:$0]  %s0, 256, %s18, [#allocation4]
    $region5: #{snp_encoder_linear.1} parent=1 // pred_fallthru
      _
    // Predicated region
    $region6: #{snp_encoder_linear.1} parent=1 // pred_check
      _
    $region7: #{snp_encoder_linear.1} parent=1 // pred_check_branch
      %22 = sbr.rel (0) target = $region9
    $region8: #{snp_encoder_linear.1} parent=1 // pred_region
      %s24 = ssub.s32 4096, 4096
      %25 = vsyncadd [#allocation7], %s24
      %s26 = sshll.u32 [#allocation6], 4
      %s27 = int_to_ptr.vmem [resolvable:$true] %s26
      %32 = dma.hbm_to_vmem [thread:$0]  %s1, 4096, %s27, [#allocation7], 128, 128, 8
    $region9: #{snp_encoder_linear.1} parent=1 // pred_fallthru
      _
    // Predicated region
    $region10: #{snp_encoder_linear.1} parent=1 // pred_check
      _
    $region11: #{snp_encoder_linear.1} parent=1 // pred_check_branch
      %34 = sbr.rel (0) target = $region13
    $region12: #{snp_encoder_linear.1} parent=1 // pred_region
      _
    $region13: #{snp_encoder_linear.1} parent=1 // pred_fallthru
      _
    // Predicated region
    $region14: #{snp_encoder_linear.1} parent=1 // pred_check
      _
    $region15: #{snp_encoder_linear.1} parent=1 // pred_check_branch
      %36 = sbr.rel (0) target = $region17
    $region16: #{snp_encoder_linear.1} parent=1 // pred_region
      %37 = dma.done [#allocation4], 256
    $region17: #{snp_encoder_linear.1} parent=1 // pred_fallthru
      _
    // Predicated region
    $region18: #{snp_encoder_linear.1} parent=1 // pred_check
      _
    $region19: #{snp_encoder_linear.1} parent=1 // pred_check_branch
      %39 = sbr.rel (0) target = $region21
    $region20: #{snp_encoder_linear.1} parent=1 // pred_region
      %40 = dma.done [#allocation7], 4096
    $region21: #{snp_encoder_linear.1} parent=1 // pred_fallthru
      _
    %vm42 = vcmask 1044304
    %43 = vst.msk [vmem:[#allocation2 + $0x4] sm:$0xf] %vm42, 0
    %v44 = vld [vmem:[#allocation3] sm:$0xff]
    %v45 = vld [vmem:[#allocation3 + $0x8] sm:$0xff]
    %v46 = vpack.c.bf16 %v44, %v44
    %v47 = vpack.c.bf16 %v45, %v45
    %v50 = vunpack.c.l.b16 %v46
    %v51 = vunpack.c.l.b16 %v47
    %v52 = vpack.c.b16 %v51, %v50
    %vm54 = vcmask 1043456
    %vm55 = vcmask 867332
    %vm56 = vmor %vm55, %vm54
    %57 = vst.msk [vmem:[#allocation2] sm:$0xff] %vm56, %v52
    %v58 = vld [vmem:[#allocation2] sm:$0xff]
    %v59 = vld [vmem:[#allocation6] sm:$0xff]
    %v60 = vld [vmem:[#allocation6 + $0x8] sm:$0xff]
    %v61 = vld [vmem:[#allocation6 + $0x10] sm:$0xff]
    %v62 = vld [vmem:[#allocation6 + $0x18] sm:$0xff]
    %v63 = vld [vmem:[#allocation6 + $0x20] sm:$0xff]
    %v64 = vld [vmem:[#allocation6 + $0x28] sm:$0xff]
    %v65 = vld [vmem:[#allocation6 + $0x30] sm:$0xff]
    %v66 = vld [vmem:[#allocation6 + $0x38] sm:$0xff]
    %v67 = vld [vmem:[#allocation6 + $0x40] sm:$0xff]
    %v68 = vld [vmem:[#allocation6 + $0x48] sm:$0xff]
    %v69 = vld [vmem:[#allocation6 + $0x50] sm:$0xff]
    %v70 = vld [vmem:[#allocation6 + $0x58] sm:$0xff]
    %v71 = vld [vmem:[#allocation6 + $0x60] sm:$0xff]
    %v72 = vld [vmem:[#allocation6 + $0x68] sm:$0xff]
    %v73 = vld [vmem:[#allocation6 + $0x70] sm:$0xff]
    %v74 = vld [vmem:[#allocation6 + $0x78] sm:$0xff]
    %v75 = vld [vmem:[#allocation6 + $0x80] sm:$0xff]
    %v76 = vld [vmem:[#allocation6 + $0x88] sm:$0xff]
    %v77 = vld [vmem:[#allocation6 + $0x90] sm:$0xff]
    %v78 = vld [vmem:[#allocation6 + $0x98] sm:$0xff]
    %v79 = vld [vmem:[#allocation6 + $0xa0] sm:$0xff]
    %v80 = vld [vmem:[#allocation6 + $0xa8] sm:$0xff]
    %v81 = vld [vmem:[#allocation6 + $0xb0] sm:$0xff]
    %v82 = vld [vmem:[#allocation6 + $0xb8] sm:$0xff]
    %v83 = vld [vmem:[#allocation6 + $0xc0] sm:$0xff]
    %v84 = vld [vmem:[#allocation6 + $0xc8] sm:$0xff]
    %v85 = vld [vmem:[#allocation6 + $0xd0] sm:$0xff]
    %v86 = vld [vmem:[#allocation6 + $0xd8] sm:$0xff]
    %v87 = vld [vmem:[#allocation6 + $0xe0] sm:$0xff]
    %v88 = vld [vmem:[#allocation6 + $0xe8] sm:$0xff]
    %v89 = vld [vmem:[#allocation6 + $0xf0] sm:$0xff]
    %v90 = vld [vmem:[#allocation6 + $0xf8] sm:$0xff]
    %v91 = vld [vmem:[%s2] sm:$0x3]
    %v93 = vlaneseq
    %v94 = vshrl.u32 %v93, 7
    %v95 = vsub.s32 0, %v94
    %v96 = vrot.slane %v91, %v95
    %v97 = vlaneseq
    %v98 = vshrl.u32 %v97, 7
    %v99 = vsub.s32 1, %v98
    %v100 = vrot.slane %v91, %v99
    %v104 = vunpack.c.l.b16 %v58
    %v105 = vunpack.c.h.b16 %v58
    %v106 = vpack.c.b16 %v104, %v104
    %v107 = vpack.c.b16 %v105, %v105
    %v142 = vunpack.c.l.b16 %v59
    %v143 = vunpack.c.h.b16 %v59
    %v144 = vunpack.c.l.b16 %v60
    %v145 = vunpack.c.h.b16 %v60
    %v146 = vunpack.c.l.b16 %v61
    %v147 = vunpack.c.h.b16 %v61
    %v148 = vunpack.c.l.b16 %v62
    %v149 = vunpack.c.h.b16 %v62
    %v150 = vunpack.c.l.b16 %v63
    %v151 = vunpack.c.h.b16 %v63
    %v152 = vunpack.c.l.b16 %v64
    %v153 = vunpack.c.h.b16 %v64
    %v154 = vunpack.c.l.b16 %v65
    %v155 = vunpack.c.h.b16 %v65
    %v156 = vunpack.c.l.b16 %v66
    %v157 = vunpack.c.h.b16 %v66
    %v158 = vunpack.c.l.b16 %v67
    %v159 = vunpack.c.h.b16 %v67
    %v160 = vunpack.c.l.b16 %v68
    %v161 = vunpack.c.h.b16 %v68
    %v162 = vunpack.c.l.b16 %v69
    %v163 = vunpack.c.h.b16 %v69
    %v164 = vunpack.c.l.b16 %v70
    %v165 = vunpack.c.h.b16 %v70
    %v166 = vunpack.c.l.b16 %v71
    %v167 = vunpack.c.h.b16 %v71
    %v168 = vunpack.c.l.b16 %v72
    %v169 = vunpack.c.h.b16 %v72
    %v170 = vunpack.c.l.b16 %v73
    %v171 = vunpack.c.h.b16 %v73
    %v172 = vunpack.c.l.b16 %v74
    %v173 = vunpack.c.h.b16 %v74
    %v174 = vunpack.c.l.b16 %v75
    %v175 = vunpack.c.h.b16 %v75
    %v176 = vunpack.c.l.b16 %v76
    %v177 = vunpack.c.h.b16 %v76
    %v178 = vunpack.c.l.b16 %v77
    %v179 = vunpack.c.h.b16 %v77
    %v180 = vunpack.c.l.b16 %v78
    %v181 = vunpack.c.h.b16 %v78
    %v182 = vunpack.c.l.b16 %v79
    %v183 = vunpack.c.h.b16 %v79
    %v184 = vunpack.c.l.b16 %v80
    %v185 = vunpack.c.h.b16 %v80
    %v186 = vunpack.c.l.b16 %v81
    %v187 = vunpack.c.h.b16 %v81
    %v188 = vunpack.c.l.b16 %v82
    %v189 = vunpack.c.h.b16 %v82
    %v190 = vunpack.c.l.b16 %v83
    %v191 = vunpack.c.h.b16 %v83
    %v192 = vunpack.c.l.b16 %v84
    %v193 = vunpack.c.h.b16 %v84
    %v194 = vunpack.c.l.b16 %v85
    %v195 = vunpack.c.h.b16 %v85
    %v196 = vunpack.c.l.b16 %v86
    %v197 = vunpack.c.h.b16 %v86
    %v198 = vunpack.c.l.b16 %v87
    %v199 = vunpack.c.h.b16 %v87
    %v200 = vunpack.c.l.b16 %v88
    %v201 = vunpack.c.h.b16 %v88
    %v202 = vunpack.c.l.b16 %v89
    %v203 = vunpack.c.h.b16 %v89
    %v204 = vunpack.c.l.b16 %v90
    %v205 = vunpack.c.h.b16 %v90
    %v206 = vpack.c.b16 %v144, %v142
    %v207 = vpack.c.b16 %v145, %v143
    %v208 = vpack.c.b16 %v148, %v146
    %v209 = vpack.c.b16 %v149, %v147
    %v210 = vpack.c.b16 %v152, %v150
    %v211 = vpack.c.b16 %v153, %v151
    %v212 = vpack.c.b16 %v156, %v154
    %v213 = vpack.c.b16 %v157, %v155
    %v214 = vpack.c.b16 %v160, %v158
    %v215 = vpack.c.b16 %v161, %v159
    %v216 = vpack.c.b16 %v164, %v162
    %v217 = vpack.c.b16 %v165, %v163
    %v218 = vpack.c.b16 %v168, %v166
    %v219 = vpack.c.b16 %v169, %v167
    %v220 = vpack.c.b16 %v172, %v170
    %v221 = vpack.c.b16 %v173, %v171
    %v222 = vpack.c.b16 %v176, %v174
    %v223 = vpack.c.b16 %v177, %v175
    %v224 = vpack.c.b16 %v180, %v178
    %v225 = vpack.c.b16 %v181, %v179
    %v226 = vpack.c.b16 %v184, %v182
    %v227 = vpack.c.b16 %v185, %v183
    %v228 = vpack.c.b16 %v188, %v186
    %v229 = vpack.c.b16 %v189, %v187
    %v230 = vpack.c.b16 %v192, %v190
    %v231 = vpack.c.b16 %v193, %v191
    %v232 = vpack.c.b16 %v196, %v194
    %v233 = vpack.c.b16 %v197, %v195
    %v234 = vpack.c.b16 %v200, %v198
    %v235 = vpack.c.b16 %v201, %v199
    %v236 = vpack.c.b16 %v204, %v202
    %v237 = vpack.c.b16 %v205, %v203
    %270 = vmatprep.subr.bf16.mxu0 %v207
    %271 = vmatpush1.bf16.msra.mxu0 %v206
    %272 = vmatprep.subr.bf16.mxu0 %v209
    %273 = vmatpush1.bf16.msra.mxu0 %v208
    %274 = vmatprep.subr.bf16.mxu0 %v211
    %275 = vmatpush1.bf16.msra.mxu0 %v210
    %276 = vmatprep.subr.bf16.mxu0 %v213
    %277 = vmatpush1.bf16.msra.mxu0 %v212
    %278 = vmatprep.subr.bf16.mxu0 %v215
    %279 = vmatpush1.bf16.msra.mxu0 %v214
    %280 = vmatprep.subr.bf16.mxu0 %v217
    %281 = vmatpush1.bf16.msra.mxu0 %v216
    %282 = vmatprep.subr.bf16.mxu0 %v219
    %283 = vmatpush1.bf16.msra.mxu0 %v218
    %284 = vmatprep.subr.bf16.mxu0 %v221
    %285 = vmatpush1.bf16.msra.mxu0 %v220
    %286 = vmatprep.subr.bf16.mxu0 %v223
    %287 = vmatpush1.bf16.msra.mxu0 %v222
    %288 = vmatprep.subr.bf16.mxu0 %v225
    %289 = vmatpush1.bf16.msra.mxu0 %v224
    %290 = vmatprep.subr.bf16.mxu0 %v227
    %291 = vmatpush1.bf16.msra.mxu0 %v226
    %292 = vmatprep.subr.bf16.mxu0 %v229
    %293 = vmatpush1.bf16.msra.mxu0 %v228
    %294 = vmatprep.subr.bf16.mxu0 %v231
    %295 = vmatpush1.bf16.msra.mxu0 %v230
    %296 = vmatprep.subr.bf16.mxu0 %v233
    %297 = vmatpush1.bf16.msra.mxu0 %v232
    %298 = vmatprep.subr.bf16.mxu0 %v235
    %299 = vmatpush1.bf16.msra.mxu0 %v234
    %300 = vmatprep.subr.bf16.mxu0 %v237
    %301 = vmatpush1.bf16.msra.mxu0 %v236
    %302 = vmatprep.mubr.bf16.mxu0 %v107
    %303 = vmatmul.mubr.bf16.gmra.mrb[0].mxu0 %v106
    %v304 = vpop.f32.mrb[0].mxu0
    %v305 = vadd.f32 %v96, %v304
    %v306 = vpop.f32.mrb[0].mxu0
    %v307 = vadd.f32 %v100, %v306
    %v308 = vpop.f32.mrb[0].mxu0
    %v309 = vpop.f32.mrb[0].mxu0
    %310 = vdwg.mxu0
    %311 = vst [vmem:[#allocation8] sm:$0xff] %v305
    %312 = vst [vmem:[#allocation8 + $0x8] sm:$0xff] %v307
    // Predicated region
    $region22: #{snp_encoder_linear.1} parent=1 // pred_check
      _
    $region23: #{snp_encoder_linear.1} parent=1 // pred_check_branch
      %314 = sbr.rel (0) target = $region25
    $region24: #{snp_encoder_linear.1} parent=1 // pred_region
      %s316 = ssub.s32 256, 256
      %317 = vsyncadd [#allocation5], %s316
      %s319 = sshll.u32 [#allocation8], 4
      %s320 = int_to_ptr.vmem [resolvable:$true] %s319
      %322 = dma.vmem_to_hbm [thread:$0]  %s320, 256, %s3, [#allocation5]
    $region25: #{snp_encoder_linear.1} parent=1 // pred_fallthru
      _
    // Predicated region
    $region26: #{snp_encoder_linear.1} parent=1 // pred_check
      _
    $region27: #{snp_encoder_linear.1} parent=1 // pred_check_branch
      %324 = sbr.rel (0) target = $region29
    $region28: #{snp_encoder_linear.1} parent=1 // pred_region
      %325 = dma.done [#allocation5], 256
    $region29: #{snp_encoder_linear.1} parent=1 // pred_fallthru
      _
    %326 = vsyncpa [#allocation4], 1
    %327 = vsyncpa [#allocation7], 1
    %328 = vsyncpa [#allocation5], 1

</llo_original>
